<compile_context>
chip_gen: v6e
topology: v6e:2x2x1
jax: 0.10.0
libtpu: 0.0.40
codegen_flags: <defaults>
</compile_context>

<pallas_src>
import functools

import jax
import jax.numpy as jnp
from jax.experimental import pallas as pl
from jax.experimental.pallas import tpu as pltpu


def _round_up(x, m):
    return ((x + m - 1) // m) * m


def _atom_embedding_kernel(xs_ref, xv_ref, ws_ref, wv_ref, b_ref, out_ref, *,
                           in_scalar):
    # xs_ref: [TILE_N, F_total]   full scalar input (may have extra columns)
    # xv_ref: [TILE_N, 3]         raw vector input (normalizer folded into wv)
    # ws_ref: [F_total, F_OUT]    scalar weights (cols 0..out_scalar-1), zero elsewhere
    # wv_ref: [3, F_OUT]          row c holds w_vec/normalizer in its component slot
    # b_ref : [1, F_OUT]          fused bias [b_sca | b_vec | b_vec | b_vec]
    # out_ref: [TILE_N, F_OUT]    fused lane-dense output slab

    xs = xs_ref[...]
    # Exact `scalar_input[:, :in_scalar]` semantics (NaN/Inf-safe for extra cols).
    lane = jax.lax.broadcasted_iota(jnp.int32, xs.shape, 1)
    xs = jnp.where(lane < in_scalar, xs, 0.0)

    # Scalar embedding on the MXU (free filler — kernel is HBM-bound).
    acc = jnp.dot(xs, ws_ref[...], preferred_element_type=jnp.float32)

    # Vector embedding: rank-1 per component, pure VPU broadcast-multiply-add.
    xv = xv_ref[...]
    acc = acc + xv[:, 0:1] * wv_ref[0:1, :]
    acc = acc + xv[:, 1:2] * wv_ref[1:2, :]
    acc = acc + xv[:, 2:3] * wv_ref[2:3, :]

    out_ref[...] = acc + b_ref[...]


def atom_embedding_forward(scalar_input, vector_input, params, *,
                           in_scalar, vector_normalizer=20.0,
                           tile_n_max=2048):
    """Pallas equivalent of AtomEmbedding.forward.

    scalar_input: [N, >=in_scalar] float
    vector_input: [N, 3] float
    params: (w_sca [out_scalar, in_scalar], b_sca [out_scalar],
             w_vec [out_vector, 1],        b_vec [out_vector])   (PyTorch Linear layout)
    returns: (sca_emb [N, out_scalar], vec_emb [N, out_vector, 3])
    """
    w_sca, b_sca, w_vec, b_vec = params
    assert vector_input.shape[1:] == (3,), 'Not support. Only one vector can be input'

    N = scalar_input.shape[0]
    F_total = scalar_input.shape[1]
    out_scalar = w_sca.shape[0]
    out_vector = w_vec.shape[0]
    fused_out = out_scalar + 3 * out_vector

    # ---- tiny (weight-sized) host-side prep, done once at trace time ----------
    # Scalar weights placed in columns [0, out_scalar); rows >= in_scalar zeroed
    # (the in-kernel lane mask also zeroes the corresponding inputs).
    ws_fused = jnp.zeros((F_total, fused_out), jnp.float32)
    ws_fused = ws_fused.at[:in_scalar, :out_scalar].set(
        jnp.transpose(w_sca).astype(jnp.float32))

    # Vector weights: 1/normalizer folded in; row c -> component-c column block.
    wv_row = (w_vec.reshape(1, out_vector).astype(jnp.float32) / vector_normalizer)
    wv_fused = jnp.zeros((3, fused_out), jnp.float32)
    for c in range(3):
        lo = out_scalar + c * out_vector
        wv_fused = wv_fused.at[c, lo:lo + out_vector].set(wv_row[0])

    b_fused = jnp.concatenate(
        [b_sca.astype(jnp.float32)] + [b_vec.astype(jnp.float32)] * 3
    ).reshape(1, fused_out)

    # ---- row tiling ------------------------------------------------------------
    tile_n = min(tile_n_max, _round_up(N, 8))
    n_pad = _round_up(N, tile_n)

    xs = scalar_input.astype(jnp.float32)
    xv = vector_input.astype(jnp.float32)
    if n_pad != N:
        xs = jnp.pad(xs, ((0, n_pad - N), (0, 0)))
        xv = jnp.pad(xv, ((0, n_pad - N), (0, 0)))

    grid = (n_pad // tile_n,)

    fused = pl.pallas_call(
        functools.partial(_atom_embedding_kernel, in_scalar=in_scalar),
        out_shape=jax.ShapeDtypeStruct((n_pad, fused_out), jnp.float32),
        grid=grid,
        in_specs=[
            pl.BlockSpec((tile_n, F_total), lambda i: (i, 0)),   # scalar input tile
            pl.BlockSpec((tile_n, 3), lambda i: (i, 0)),         # vector input tile
            pl.BlockSpec((F_total, fused_out), lambda i: (0, 0)),  # resident weights
            pl.BlockSpec((3, fused_out), lambda i: (0, 0)),        # resident weights
            pl.BlockSpec((1, fused_out), lambda i: (0, 0)),        # resident bias
        ],
        out_specs=pl.BlockSpec((tile_n, fused_out), lambda i: (i, 0)),
        compiler_params=pltpu.CompilerParams(
            dimension_semantics=("parallel",)),   # v7x: shard row tiles over 2 TCs
    )(xs, xv, ws_fused, wv_fused, b_fused)

    # ---- model-boundary glue (PyTorch output layout) ---------------------------
    sca_emb = fused[:N, :out_scalar]
    # TODO(synk): downstream TPU consumers should take [N, 3, out_vector] (or the
    # fused slab) directly; the transpose to a 3-wide last dim is kept only to
    # match the PyTorch module's return layout.
    vec_emb = fused[:N, out_scalar:].reshape(N, 3, out_vector).transpose(0, 2, 1)
    return sca_emb, vec_emb


def _reference(scalar_input, vector_input, params, *, in_scalar, vector_normalizer):
    w_sca, b_sca, w_vec, b_vec = params
    v = vector_input / vector_normalizer
    sca = scalar_input[:, :in_scalar] @ w_sca.T + b_sca
    vec = v[:, :, None] * w_vec.reshape(1, 1, -1) + b_vec.reshape(1, 1, -1)  # [N,3,OV]
    return sca, jnp.transpose(vec, (0, 2, 1))                                 # [N,OV,3]


if __name__ == "__main__":
    # Module config (small synthetic shapes).
    in_scalar, in_vector = 16, 1
    out_scalar, out_vector = 32, 32
    vector_normalizer = 20.0
    extra_cols = 4  # scalar_input has more columns than in_scalar; forward slices them.

    key = jax.random.PRNGKey(0)
    k1, k2, k3, k4, k5, k6 = jax.random.split(key, 6)

    # Deterministic synthetic parameters (PyTorch Linear weight/bias shapes).
    w_sca = jax.random.normal(k1, (out_scalar, in_scalar), jnp.float32) * 0.1
    b_sca = jax.random.normal(k2, (out_scalar,), jnp.float32) * 0.1
    w_vec = jax.random.normal(k3, (out_vector, in_vector), jnp.float32) * 0.1
    b_vec = jax.random.normal(k4, (out_vector,), jnp.float32) * 0.1
    params = (w_sca, b_sca, w_vec, b_vec)

    for N in (8, 37):  # 37 exercises the tail-padding / masking path
        ks, kv = jax.random.split(jax.random.fold_in(key, N))
        scalar_input = jax.random.normal(ks, (N, in_scalar + extra_cols), jnp.float32)
        vector_input = jax.random.normal(kv, (N, 3), jnp.float32) * 10.0

        sca_emb, vec_emb = atom_embedding_forward(
            scalar_input, vector_input, params,
            in_scalar=in_scalar, vector_normalizer=vector_normalizer)
        jax.block_until_ready((sca_emb, vec_emb))

        sca_ref, vec_ref = _reference(
            scalar_input, vector_input, params,
            in_scalar=in_scalar, vector_normalizer=vector_normalizer)

        assert sca_emb.shape == (N, out_scalar)
        assert vec_emb.shape == (N, out_vector, 3)
        assert jnp.allclose(sca_emb, sca_ref, atol=1e-5, rtol=1e-5)
        assert jnp.allclose(vec_emb, vec_ref, atol=1e-5, rtol=1e-5)

    print("KERNEL_OK")
</pallas_src>

<mosaic_0001>
module attributes {stable_mosaic.version = 11 : i64} {
  func.func @_atom_embedding_kernel(%arg0: i32, %arg1: memref<8x20xf32, #tpu.memory_space<vmem>>, %arg2: memref<8x3xf32, #tpu.memory_space<vmem>>, %arg3: memref<20x128xf32, #tpu.memory_space<vmem>>, %arg4: memref<3x128xf32, #tpu.memory_space<vmem>>, %arg5: memref<1x128xf32, #tpu.memory_space<vmem>>, %arg6: memref<8x128xf32, #tpu.memory_space<vmem>>) attributes {dimension_semantics = [#tpu.dimension_semantics<parallel>], iteration_bounds = array<i64: 1>, scalar_prefetch = 0 : i64, scratch_operands = 0 : i64, tpu.core_type = #tpu.core_type<tc>, window_params = [{transform_indices = @transform_0, window_bounds = array<i64: 8, 20>}, {transform_indices = @transform_1, window_bounds = array<i64: 8, 3>}, {pipeline_mode = #tpu.pipeline_mode<synchronous>, transform_indices = @transform_2, window_bounds = array<i64: 20, 128>}, {pipeline_mode = #tpu.pipeline_mode<synchronous>, transform_indices = @transform_3, window_bounds = array<i64: 3, 128>}, {pipeline_mode = #tpu.pipeline_mode<synchronous>, transform_indices = @transform_4, window_bounds = array<i64: 1, 128>}, {transform_indices = @transform_5, window_bounds = array<i64: 8, 128>}]} {
    %c0 = arith.constant 0 : index
    %c0_0 = arith.constant 0 : index
    %0 = vector.load %arg1[%c0, %c0_0] : memref<8x20xf32, #tpu.memory_space<vmem>>, vector<8x20xf32>
    %1 = tpu.iota {dimensions = array<i32: 1>} : vector<8x20xi32>
    %c16_i32 = arith.constant 16 : i32
    %2 = vector.broadcast %c16_i32 : i32 to vector<8x20xi32>
    %3 = arith.cmpi slt, %1, %2 : vector<8x20xi32>
    %cst = arith.constant 0.000000e+00 : f32
    %4 = vector.broadcast %cst : f32 to vector<8x20xf32>
    %5 = arith.select %3, %0, %4 : vector<8x20xi1>, vector<8x20xf32>
    %c0_1 = arith.constant 0 : index
    %c0_2 = arith.constant 0 : index
    %6 = vector.load %arg3[%c0_1, %c0_2] : memref<20x128xf32, #tpu.memory_space<vmem>>, vector<20x128xf32>
    %cst_3 = arith.constant dense<0.000000e+00> : vector<8x128xf32>
    %7 = tpu.matmul %5, %6, %cst_3 {dimension_numbers = #tpu.dot_dimension_numbers<[1], [0], [0], [1], [0, 0, 1, 1], [], []>} : vector<8x20xf32>, vector<20x128xf32>, vector<8x128xf32> -> vector<8x128xf32>
    %c0_4 = arith.constant 0 : index
    %c0_5 = arith.constant 0 : index
    %8 = vector.load %arg2[%c0_4, %c0_5] : memref<8x3xf32, #tpu.memory_space<vmem>>, vector<8x3xf32>
    %9 = vector.extract_strided_slice %8 {offsets = [0, 0], sizes = [8, 1], strides = [1, 1]} : vector<8x3xf32> to vector<8x1xf32>
    %c0_6 = arith.constant 0 : index
    %c0_7 = arith.constant 0 : index
    %10 = vector.load %arg4[%c0_6, %c0_7] : memref<3x128xf32, #tpu.memory_space<vmem>>, vector<1x128xf32>
    %11 = vector.broadcast %9 : vector<8x1xf32> to vector<8x128xf32>
    %12 = vector.broadcast %10 : vector<1x128xf32> to vector<8x128xf32>
    %13 = arith.mulf %11, %12 : vector<8x128xf32>
    %14 = arith.addf %7, %13 : vector<8x128xf32>
    %15 = vector.extract_strided_slice %8 {offsets = [0, 1], sizes = [8, 1], strides = [1, 1]} : vector<8x3xf32> to vector<8x1xf32>
    %c1 = arith.constant 1 : index
    %c0_8 = arith.constant 0 : index
    %16 = vector.load %arg4[%c1, %c0_8] : memref<3x128xf32, #tpu.memory_space<vmem>>, vector<1x128xf32>
    %17 = vector.broadcast %15 : vector<8x1xf32> to vector<8x128xf32>
    %18 = vector.broadcast %16 : vector<1x128xf32> to vector<8x128xf32>
    %19 = arith.mulf %17, %18 : vector<8x128xf32>
    %20 = arith.addf %14, %19 : vector<8x128xf32>
    %21 = vector.extract_strided_slice %8 {offsets = [0, 2], sizes = [8, 1], strides = [1, 1]} : vector<8x3xf32> to vector<8x1xf32>
    %c2 = arith.constant 2 : index
    %c0_9 = arith.constant 0 : index
    %22 = vector.load %arg4[%c2, %c0_9] : memref<3x128xf32, #tpu.memory_space<vmem>>, vector<1x128xf32>
    %23 = vector.broadcast %21 : vector<8x1xf32> to vector<8x128xf32>
    %24 = vector.broadcast %22 : vector<1x128xf32> to vector<8x128xf32>
    %25 = arith.mulf %23, %24 : vector<8x128xf32>
    %26 = arith.addf %20, %25 : vector<8x128xf32>
    %c0_10 = arith.constant 0 : index
    %c0_11 = arith.constant 0 : index
    %27 = vector.load %arg5[%c0_10, %c0_11] : memref<1x128xf32, #tpu.memory_space<vmem>>, vector<1x128xf32>
    %28 = vector.broadcast %27 : vector<1x128xf32> to vector<8x128xf32>
    %29 = arith.addf %26, %28 : vector<8x128xf32>
    %c0_12 = arith.constant 0 : index
    %c0_13 = arith.constant 0 : index
    %30 = vector.load %arg6[%c0_12, %c0_13] : memref<8x128xf32, #tpu.memory_space<vmem>>, vector<8x128xf32>
    tpu.vector_store %arg6[%c0_12, %c0_13], %29 {strides = array<i32>} : memref<8x128xf32, #tpu.memory_space<vmem>>, vector<8x128xf32>,
    return
  }
  func.func @transform_0(%arg0: i32) -> (i32, i32) {
    %c0_i32 = arith.constant 0 : i32
    %c0_i32_0 = arith.constant 0 : i32
    return %arg0, %c0_i32 : i32, i32
  }
  func.func @transform_1(%arg0: i32) -> (i32, i32) {
    %c0_i32 = arith.constant 0 : i32
    %c0_i32_0 = arith.constant 0 : i32
    return %arg0, %c0_i32 : i32, i32
  }
  func.func @transform_2(%arg0: i32) -> (i32, i32) {
    %c0_i32 = arith.constant 0 : i32
    %c0_i32_0 = arith.constant 0 : i32
    %c0_i32_1 = arith.constant 0 : i32
    return %c0_i32, %c0_i32_0 : i32, i32
  }
  func.func @transform_3(%arg0: i32) -> (i32, i32) {
    %c0_i32 = arith.constant 0 : i32
    %c0_i32_0 = arith.constant 0 : i32
    %c0_i32_1 = arith.constant 0 : i32
    return %c0_i32, %c0_i32_0 : i32, i32
  }
  func.func @transform_4(%arg0: i32) -> (i32, i32) {
    %c0_i32 = arith.constant 0 : i32
    %c0_i32_0 = arith.constant 0 : i32
    %c0_i32_1 = arith.constant 0 : i32
    return %c0_i32, %c0_i32_0 : i32, i32
  }
  func.func @transform_5(%arg0: i32) -> (i32, i32) {
    %c0_i32 = arith.constant 0 : i32
    %c0_i32_0 = arith.constant 0 : i32
    return %arg0, %c0_i32 : i32, i32
  }
}

</mosaic_0001>

<llo_original>
// kernel: tpu_custom_call.1
$region0: #{tpu_custom_call.1}
  #allocation0 [shape = 'u32[]', space=smem, size = 0x4, offset = 0x4, fixed_abs, tag = 'smem constant byte address 0x4 - core index']
  #allocation1 [shape = 'u32[144,128]{1,0:T(1,128)}', space=vmem, size = 0x12000, scoped, tag = 'internal scratch']
  %s0 = inlined_call_operand.vmem [shape: f32[8,20], index: 0, kind: input, shape index: {}]
  %s1 = inlined_call_operand.vmem [shape: f32[8,3], index: 1, kind: input, shape index: {}]
  %s2 = inlined_call_operand.hbm [shape: f32[20,128], index: 2, kind: input, shape index: {}]
  %s3 = inlined_call_operand.vmem [shape: f32[3,128], index: 3, kind: input, shape index: {}]
  %s4 = inlined_call_operand.vmem [shape: f32[1,128], index: 4, kind: input, shape index: {}]
  %s5 = inlined_call_operand.hbm [shape: f32[8,128], index: 5, kind: output, shape index: {}]
  %s6 = sld [smem:[#allocation0]]
  $region34: #{tpu_custom_call.1} parent=0
    _
  %s8 = ssub.s32 1, %s6
  %s9 = scalar_select 0, %s8, %s6
  $region1: #{tpu_custom_call.1} parent=0
    #allocation2 [shape = 'u8[12288]{0}', space=vmem, size = 0x3000, scoped, tag = 'input window, operand 2, single buffered']
    #allocation3 [shape = 's32[1]{0}', space=sflag, size = 0x4, scoped, tag = 'scoped memory for tpu_custom_call.1']
    #allocation4 [shape = 's32[1]{0}', space=sflag, size = 0x4, scoped, tag = 'scoped memory for tpu_custom_call.1']
    #allocation5 [shape = 'u8[4096]{0}', space=vmem, size = 0x1000, scoped, tag = 'output window, operand 0, single buffered']
    %10 = vsyncpa [#allocation3], 0
    %11 = vsyncpa [#allocation4], 0
    // Predicated region
    $region2: #{tpu_custom_call.1} parent=1 // pred_check
      _
    $region3: #{tpu_custom_call.1} parent=1 // pred_check_branch
      %13 = sbr.rel (0) target = $region5
    $region4: #{tpu_custom_call.1} parent=1 // pred_region
      _
    $region5: #{tpu_custom_call.1} parent=1 // pred_fallthru
      _
    // Predicated region
    $region6: #{tpu_custom_call.1} parent=1 // pred_check
      _
    $region7: #{tpu_custom_call.1} parent=1 // pred_check_branch
      %15 = sbr.rel (0) target = $region9
    $region8: #{tpu_custom_call.1} parent=1 // pred_region
      _
    $region9: #{tpu_custom_call.1} parent=1 // pred_fallthru
      _
    // Predicated region
    $region10: #{tpu_custom_call.1} parent=1 // pred_check
      _
    $region11: #{tpu_custom_call.1} parent=1 // pred_check_branch
      %17 = sbr.rel (0) target = $region13
    $region12: #{tpu_custom_call.1} parent=1 // pred_region
      %s19 = ssub.s32 384, 384
      %20 = vsyncadd [#allocation3], %s19
      %s21 = sshll.u32 [#allocation2], 4
      %s22 = int_to_ptr.vmem [resolvable:$true] %s21
      %27 = dma.hbm_to_vmem [thread:$0]  %s2, 384, %s22, [#allocation3], 128, 128, 8
    $region13: #{tpu_custom_call.1} parent=1 // pred_fallthru
      _
    // Predicated region
    $region14: #{tpu_custom_call.1} parent=1 // pred_check
      _
    $region15: #{tpu_custom_call.1} parent=1 // pred_check_branch
      %29 = sbr.rel (0) target = $region17
    $region16: #{tpu_custom_call.1} parent=1 // pred_region
      _
    $region17: #{tpu_custom_call.1} parent=1 // pred_fallthru
      _
    // Predicated region
    $region18: #{tpu_custom_call.1} parent=1 // pred_check
      _
    $region19: #{tpu_custom_call.1} parent=1 // pred_check_branch
      %31 = sbr.rel (0) target = $region21
    $region20: #{tpu_custom_call.1} parent=1 // pred_region
      _
    $region21: #{tpu_custom_call.1} parent=1 // pred_fallthru
      _
    // Predicated region
    $region22: #{tpu_custom_call.1} parent=1 // pred_check
      _
    $region23: #{tpu_custom_call.1} parent=1 // pred_check_branch
      %33 = sbr.rel (0) target = $region25
    $region24: #{tpu_custom_call.1} parent=1 // pred_region
      %34 = dma.done [#allocation3], 384
    $region25: #{tpu_custom_call.1} parent=1 // pred_fallthru
      _
    %v35 = vld [vmem:[%s0] sm:$0xff]
    %v36 = vlaneseq
    %v37 = vand.u32 %v36, 127
    %vm38 = vcmp.lt.s32.totalorder %v37, 16
    %v39 = vsel %vm38, %v35, 0.0
    %v40 = vld [vmem:[#allocation2] sm:$0xff]
    %v41 = vld [vmem:[#allocation2 + $0x8] sm:$0xff]
    %v42 = vld [vmem:[#allocation2 + $0x10] sm:$0xf]
    %v43 = vld [vmem:[%s1] sm:$0xff]
    %v44 = vld [vmem:[%s3] sm:$0x1]
    %46 = vset.pattern.permute.xlu0 0
    %47 = vperm.xlu0 %46, %v43
    %v48 = vpop.permute.xlu0 %47
    %v50 = vlaneseq
    %v51 = vshrl.u32 %v50, 7
    %v52 = vsub.s32 0, %v51
    %v53 = vrot.slane %v44, %v52
    %v54 = vmul.f32 %v48, %v53
    %vm55 = vcmask 162816
    %v57 = vsel %vm55, %v39, 0
    %vm59 = vcmask 1043456
    %v61 = vsel %vm59, %v42, 0
    %63 = vmatprep.subr.mxu0 0.0
    %64 = vmatpush1.msra.mxu0 0.0
    %65 = vmatprep.subr.mxu0 0.0
    %66 = vmatpush1.msra.mxu0 0.0
    %67 = vmatprep.subr.mxu0 0.0
    %68 = vmatpush1.msra.mxu0 0.0
    %69 = vmatprep.subr.mxu0 0.0
    %70 = vmatpush1.msra.mxu0 0.0
    %71 = vmatprep.subr.mxu0 0.0
    %72 = vmatpush1.msra.mxu0 0.0
    %73 = vmatprep.subr.mxu0 0.0
    %74 = vmatpush1.msra.mxu0 0.0
    %75 = vmatprep.subr.mxu0 0.0
    %76 = vmatpush1.msra.mxu0 0.0
    %77 = vmatprep.subr.mxu0 0.0
    %78 = vmatpush1.msra.mxu0 0.0
    %79 = vmatprep.subr.mxu0 0.0
    %80 = vmatpush1.msra.mxu0 0.0
    %81 = vmatprep.subr.mxu0 0.0
    %82 = vmatpush1.msra.mxu0 0.0
    %83 = vmatprep.subr.mxu0 0.0
    %84 = vmatpush1.msra.mxu0 0.0
    %85 = vmatprep.subr.mxu0 0.0
    %86 = vmatpush1.msra.mxu0 0.0
    %87 = vmatprep.subr.mxu0 0.0
    %88 = vmatpush1.msra.mxu0 0.0
    %89 = vmatprep.subr.mxu0 0.0
    %90 = vmatpush1.msra.mxu0 %v61
    %91 = vmatprep.subr.mxu0 0.0
    %92 = vmatpush1.msra.mxu0 %v41
    %93 = vmatprep.subr.mxu0 0.0
    %94 = vmatpush1.msra.mxu0 %v40
    %95 = vmatprep.subr.mxu0 0.0
    %96 = vmatpush2.msra.mxu0 0.0
    %97 = vmatprep.subr.mxu0 0.0
    %98 = vmatpush2.msra.mxu0 0.0
    %99 = vmatprep.subr.mxu0 0.0
    %100 = vmatpush2.msra.mxu0 0.0
    %101 = vmatprep.subr.mxu0 0.0
    %102 = vmatpush2.msra.mxu0 0.0
    %103 = vmatprep.subr.mxu0 0.0
    %104 = vmatpush2.msra.mxu0 0.0
    %105 = vmatprep.subr.mxu0 0.0
    %106 = vmatpush2.msra.mxu0 0.0
    %107 = vmatprep.subr.mxu0 0.0
    %108 = vmatpush2.msra.mxu0 0.0
    %109 = vmatprep.subr.mxu0 0.0
    %110 = vmatpush2.msra.mxu0 0.0
    %111 = vmatprep.subr.mxu0 0.0
    %112 = vmatpush2.msra.mxu0 0.0
    %113 = vmatprep.subr.mxu0 0.0
    %114 = vmatpush2.msra.mxu0 0.0
    %115 = vmatprep.subr.mxu0 0.0
    %116 = vmatpush2.msra.mxu0 0.0
    %117 = vmatprep.subr.mxu0 0.0
    %118 = vmatpush2.msra.mxu0 0.0
    %119 = vmatprep.subr.mxu0 0.0
    %120 = vmatpush2.msra.mxu0 0.0
    %121 = vmatprep.subr.mxu0 0.0
    %122 = vmatpush2.msra.mxu0 0.0
    %123 = vmatprep.subr.mxu0 0.0
    %124 = vmatpush2.msra.mxu0 0.0
    %125 = vmatprep.subr.mxu0 0.0
    %126 = vmatpush2.msra.mxu0 0.0
    %127 = vmatprep.mubr.f32.mxu0 0.0
    %128 = vmatmul.mubr.f32.gmra.mxu0 %v57
    %v129 = vpop.f32.mrf.mxu0
    %v130 = vadd.f32 %v54, %v129
    %v131 = vpop.f32.mrf.mxu0
    %132 = vdwg.mxu0
    %v133 = vld [vmem:[%s3 + $0x1] sm:$0x1]
    %134 = vset.pattern.permute.xlu0 1
    %135 = vperm.xlu0 %134, %v43
    %v136 = vpop.permute.xlu0 %135
    %v138 = vlaneseq
    %v139 = vshrl.u32 %v138, 7
    %v140 = vsub.s32 0, %v139
    %v141 = vrot.slane %v133, %v140
    %v142 = vmul.f32 %v136, %v141
    %v143 = vadd.f32 %v130, %v142
    %v144 = vld [vmem:[%s3 + $0x2] sm:$0x1]
    %145 = vset.pattern.permute.xlu0 2
    %146 = vperm.xlu0 %145, %v43
    %v147 = vpop.permute.xlu0 %146
    %v149 = vlaneseq
    %v150 = vshrl.u32 %v149, 7
    %v151 = vsub.s32 0, %v150
    %v152 = vrot.slane %v144, %v151
    %v153 = vmul.f32 %v147, %v152
    %v154 = vadd.f32 %v143, %v153
    %v155 = vld [vmem:[%s4] sm:$0x1]
    %v157 = vlaneseq
    %v158 = vshrl.u32 %v157, 7
    %v159 = vsub.s32 0, %v158
    %v160 = vrot.slane %v155, %v159
    %v162 = vadd.f32 %v154, %v160
    %163 = vst [vmem:[#allocation5] sm:$0xff] %v162
    // Predicated region
    $region26: #{tpu_custom_call.1} parent=1 // pred_check
      _
    $region27: #{tpu_custom_call.1} parent=1 // pred_check_branch
      %165 = sbr.rel (0) target = $region29
    $region28: #{tpu_custom_call.1} parent=1 // pred_region
      %s167 = ssub.s32 128, 128
      %168 = vsyncadd [#allocation4], %s167
      %s170 = sshll.u32 [#allocation5], 4
      %s171 = int_to_ptr.vmem [resolvable:$true] %s170
      %173 = dma.vmem_to_hbm [thread:$0]  %s171, 128, %s5, [#allocation4]
    $region29: #{tpu_custom_call.1} parent=1 // pred_fallthru
      _
    // Predicated region
    $region30: #{tpu_custom_call.1} parent=1 // pred_check
      _
    $region31: #{tpu_custom_call.1} parent=1 // pred_check_branch
      %175 = sbr.rel (0) target = $region33
    $region32: #{tpu_custom_call.1} parent=1 // pred_region
      %176 = dma.done [#allocation4], 128
    $region33: #{tpu_custom_call.1} parent=1 // pred_fallthru
      _
    %177 = vsyncpa [#allocation3], 1
    %178 = vsyncpa [#allocation4], 1

</llo_original>
